<compile_context>
chip_gen: v7x
topology: tpu7x:2x2x1
jax: 0.10.0
libtpu: 0.0.40
codegen_flags: <defaults>
</compile_context>

<pallas_src>
import jax
import jax.numpy as jnp
from jax.experimental import pallas as pl
from jax.experimental.pallas import tpu as pltpu


# ---------------------------------------------------------------------------
# Kernels
# ---------------------------------------------------------------------------
def _im2col_conv(x_ref, w_ref, o_ref, xc_ref, left_col, right_col):
    """Build the (3*C_in, TILE_L) im2col operand once, then one fused MXU dot."""
    x = x_ref[0]                          # (C_in, TILE_L)
    c_in, tl = x.shape

    # tap k=1 (center):  x[:, l]
    xc_ref[c_in:2 * c_in, :] = x
    # tap k=0 (left):    x[:, l-1]   (column 0 comes from the halo / zero pad)
    xc_ref[0:c_in, 1:tl] = x[:, 0:tl - 1]
    xc_ref[0:c_in, 0:1] = left_col
    # tap k=2 (right):   x[:, l+1]   (last column comes from the halo / zero pad)
    xc_ref[2 * c_in:3 * c_in, 0:tl - 1] = x[:, 1:tl]
    xc_ref[2 * c_in:3 * c_in, tl - 1:tl] = right_col

    # Single fused matmul, contraction K = 3*C_in, f32 accumulation on the MXU.
    y = jnp.dot(w_ref[...], xc_ref[...], preferred_element_type=jnp.float32)
    # LeakyReLU(0.1) on the f32 accumulator.
    y = jnp.where(y >= 0, y, 0.1 * y)
    o_ref[0] = y.astype(o_ref.dtype)


def _conv_kernel_single(x_ref, w_ref, o_ref, xc_ref):
    """One tile covers the full length L: both halo columns are the zero pad."""
    c_in = x_ref.shape[1]
    zcol = jnp.zeros((c_in, 1), dtype=x_ref.dtype)
    _im2col_conv(x_ref, w_ref, o_ref, xc_ref, zcol, zcol)


def _conv_kernel_halo(x_ref, xl_ref, xr_ref, w_ref, o_ref, xc_ref):
    """L is tiled: boundary columns come from clamped neighbor-tile halo blocks."""
    j = pl.program_id(1)
    n_l = pl.num_programs(1)
    halo = xl_ref.shape[2]

    left_col = xl_ref[0, :, halo - 1:halo]     # last column of the left neighbor
    right_col = xr_ref[0, :, 0:1]              # first column of the right neighbor
    # Zero the contribution at the true sequence edges (padding=1 semantics).
    left_col = jnp.where(j > 0, left_col, jnp.zeros_like(left_col))
    right_col = jnp.where(j < n_l - 1, right_col, jnp.zeros_like(right_col))
    _im2col_conv(x_ref, w_ref, o_ref, xc_ref, left_col, right_col)


# ---------------------------------------------------------------------------
# Wrapper
# ---------------------------------------------------------------------------
def conv_block(x, w, *, tile_l=None, compute_dtype=None):
    """x: (N, C_in, L); w: (C_out, C_in, 3)  ->  (N, C_out, L).

    compute_dtype: optionally cast x / w to e.g. jnp.bfloat16 for the MXU
    (accumulation and LeakyReLU stay in float32, output keeps x's dtype).
    """
    N, C_in, L = x.shape
    C_out, _, K = w.shape
    assert K == 3
    out_dtype = x.dtype

    # Fused weight matrix: Wm[o, k*C_in + c] = w[o, c, k]  -> (C_out, 3*C_in).
    wm = jnp.transpose(w, (0, 2, 1)).reshape(C_out, 3 * C_in)

    if compute_dtype is not None:
        x = x.astype(compute_dtype)
        wm = wm.astype(compute_dtype)

    # Pick a lane-aligned L tile when possible; otherwise one tile spans L.
    if tile_l is None:
        tile_l = L
        for cand in (1024, 512, 256, 128):
            if L % cand == 0:
                tile_l = cand
                break
    assert L % tile_l == 0, "tile_l must divide L"
    n_l = L // tile_l

    grid = (N, n_l)
    x_spec = pl.BlockSpec((1, C_in, tile_l), lambda b, j: (b, 0, j))
    w_spec = pl.BlockSpec((C_out, 3 * C_in), lambda b, j: (0, 0))
    o_spec = pl.BlockSpec((1, C_out, tile_l), lambda b, j: (b, 0, j))

    cost = pl.CostEstimate(
        flops=2 * N * C_out * L * (3 * C_in) + 2 * N * C_out * L,
        transcendentals=0,
        bytes_accessed=(x.size * x.dtype.itemsize
                        + wm.size * wm.dtype.itemsize
                        + N * C_out * L * jnp.dtype(out_dtype).itemsize),
    )

    scratch = [pltpu.VMEM((3 * C_in, tile_l), x.dtype)]

    if n_l == 1:
        kernel = _conv_kernel_single
        in_specs = [x_spec, w_spec]
        operands = (x, wm)
    else:
        # Small halo blocks: only one boundary column is needed, but the block's
        # lane dim must be a 128-multiple (or the full L).
        halo = 128 if tile_l % 128 == 0 else tile_l
        r = tile_l // halo
        n_hb = L // halo
        xl_spec = pl.BlockSpec(
            (1, C_in, halo), lambda b, j: (b, 0, jnp.maximum(j * r - 1, 0)))
        xr_spec = pl.BlockSpec(
            (1, C_in, halo), lambda b, j: (b, 0, jnp.minimum((j + 1) * r, n_hb - 1)))
        kernel = _conv_kernel_halo
        in_specs = [x_spec, xl_spec, xr_spec, w_spec]
        operands = (x, x, x, wm)

    return pl.pallas_call(
        kernel,
        out_shape=jax.ShapeDtypeStruct((N, C_out, L), out_dtype),
        grid_spec=pltpu.PrefetchScalarGridSpec(
            num_scalar_prefetch=0,
            grid=grid,
            in_specs=in_specs,
            out_specs=o_spec,
            scratch_shapes=scratch,
        ),
        compiler_params=pltpu.CompilerParams(
            dimension_semantics=("parallel", "parallel"),
        ),
        cost_estimate=cost,
    )(*operands)


# ---------------------------------------------------------------------------
# Reference + self-test
# ---------------------------------------------------------------------------
def _reference(x, w):
    y = jax.lax.conv_general_dilated(
        x, w, window_strides=(1,), padding=((1, 1),),
        dimension_numbers=("NCH", "OIH", "NCH"),
    )
    return jnp.where(y >= 0, y, 0.1 * y)


if __name__ == "__main__":
    key = jax.random.PRNGKey(0)
    kx, kw, kx2, kw2 = jax.random.split(key, 4)

    # Small shapes implied by the module: Conv_Block(4, 8) on (N=2, C_in=4, L=16).
    N, C_in, C_out, L = 2, 4, 8, 16
    x = jax.random.normal(kx, (N, C_in, L), dtype=jnp.float32)
    bound = 1.0 / jnp.sqrt(jnp.asarray(C_in * 3, jnp.float32))
    w = jax.random.uniform(kw, (C_out, C_in, 3), jnp.float32, -bound, bound)

    out = jax.block_until_ready(conv_block(x, w))
    ref = _reference(x, w)
    assert out.shape == (N, C_out, L)
    assert jnp.allclose(out, ref, atol=1e-5, rtol=1e-5)

    # Larger, lane-aligned case exercising the L-tiling + halo path.
    N2, Ci2, Co2, L2 = 2, 16, 32, 512
    x2 = jax.random.normal(kx2, (N2, Ci2, L2), dtype=jnp.float32)
    b2 = 1.0 / jnp.sqrt(jnp.asarray(Ci2 * 3, jnp.float32))
    w2 = jax.random.uniform(kw2, (Co2, Ci2, 3), jnp.float32, -b2, b2)
    out2 = jax.block_until_ready(conv_block(x2, w2, tile_l=128))
    ref2 = _reference(x2, w2)
    assert jnp.allclose(out2, ref2, atol=1e-4, rtol=1e-4)

    # bf16 MXU path (v6e / v7x): bf16 operands, f32 accumulation -> looser tolerance.
    out_bf16 = jax.block_until_ready(
        conv_block(x2, w2, tile_l=128, compute_dtype=jnp.bfloat16))
    assert jnp.allclose(out_bf16, ref2, atol=5e-2, rtol=5e-2)

    print("KERNEL_OK")
</pallas_src>

<mosaic_0001>
module attributes {stable_mosaic.version = 11 : i64} {
  func.func @_conv_kernel_single(%arg0: i32, %arg1: i32, %arg2: memref<1x4x16xf32, #tpu.memory_space<vmem>>, %arg3: memref<8x12xf32, #tpu.memory_space<vmem>>, %arg4: memref<1x8x16xf32, #tpu.memory_space<vmem>>, %arg5: memref<12x16xf32, #tpu.memory_space<vmem>>) attributes {dimension_semantics = [#tpu.dimension_semantics<parallel>, #tpu.dimension_semantics<parallel>], iteration_bounds = array<i64: 2, 1>, scalar_prefetch = 0 : i64, scratch_operands = 1 : i64, tpu.core_type = #tpu.core_type<tc>, window_params = [{transform_indices = @transform_0, window_bounds = array<i64: 1, 4, 16>}, {pipeline_mode = #tpu.pipeline_mode<synchronous>, transform_indices = @transform_1, window_bounds = array<i64: 8, 12>}, {transform_indices = @transform_2, window_bounds = array<i64: 1, 8, 16>}]} {
    %cst = arith.constant 0.000000e+00 : f32
    %0 = vector.broadcast %cst : f32 to vector<4x1xf32>
    %c0 = arith.constant 0 : index
    %c0_0 = arith.constant 0 : index
    %c0_1 = arith.constant 0 : index
    %1 = vector.load %arg2[%c0, %c0_0, %c0_1] : memref<1x4x16xf32, #tpu.memory_space<vmem>>, vector<1x4x16xf32>
    %2 = vector.shape_cast %1 : vector<1x4x16xf32> to vector<4x16xf32>
    %c4 = arith.constant 4 : index
    %c0_2 = arith.constant 0 : index
    %3 = vector.load %arg5[%c4, %c0_2] : memref<12x16xf32, #tpu.memory_space<vmem>>, vector<4x16xf32>
    tpu.vector_store %arg5[%c4, %c0_2], %2 {strides = array<i32>} : memref<12x16xf32, #tpu.memory_space<vmem>>, vector<4x16xf32>,
    %4 = vector.extract_strided_slice %2 {offsets = [0, 0], sizes = [4, 15], strides = [1, 1]} : vector<4x16xf32> to vector<4x15xf32>
    %c0_3 = arith.constant 0 : index
    %c1 = arith.constant 1 : index
    %5 = vector.load %arg5[%c0_3, %c1] : memref<12x16xf32, #tpu.memory_space<vmem>>, vector<4x15xf32>
    tpu.vector_store %arg5[%c0_3, %c1], %4 {strides = array<i32>} : memref<12x16xf32, #tpu.memory_space<vmem>>, vector<4x15xf32>,
    %c0_4 = arith.constant 0 : index
    %c0_5 = arith.constant 0 : index
    %6 = vector.load %arg5[%c0_4, %c0_5] : memref<12x16xf32, #tpu.memory_space<vmem>>, vector<4x1xf32>
    tpu.vector_store %arg5[%c0_4, %c0_5], %0 {strides = array<i32>} : memref<12x16xf32, #tpu.memory_space<vmem>>, vector<4x1xf32>,
    %7 = vector.extract_strided_slice %2 {offsets = [0, 1], sizes = [4, 15], strides = [1, 1]} : vector<4x16xf32> to vector<4x15xf32>
    %c8 = arith.constant 8 : index
    %c0_6 = arith.constant 0 : index
    %8 = vector.load %arg5[%c8, %c0_6] : memref<12x16xf32, #tpu.memory_space<vmem>>, vector<4x15xf32>
    tpu.vector_store %arg5[%c8, %c0_6], %7 {strides = array<i32>} : memref<12x16xf32, #tpu.memory_space<vmem>>, vector<4x15xf32>,
    %c8_7 = arith.constant 8 : index
    %c15 = arith.constant 15 : index
    %9 = vector.load %arg5[%c8_7, %c15] : memref<12x16xf32, #tpu.memory_space<vmem>>, vector<4x1xf32>
    tpu.vector_store %arg5[%c8_7, %c15], %0 {strides = array<i32>} : memref<12x16xf32, #tpu.memory_space<vmem>>, vector<4x1xf32>,
    %c0_8 = arith.constant 0 : index
    %c0_9 = arith.constant 0 : index
    %10 = vector.load %arg3[%c0_8, %c0_9] : memref<8x12xf32, #tpu.memory_space<vmem>>, vector<8x12xf32>
    %c0_10 = arith.constant 0 : index
    %c0_11 = arith.constant 0 : index
    %11 = vector.load %arg5[%c0_10, %c0_11] : memref<12x16xf32, #tpu.memory_space<vmem>>, vector<12x16xf32>
    %cst_12 = arith.constant dense<0.000000e+00> : vector<8x16xf32>
    %12 = tpu.matmul %10, %11, %cst_12 {dimension_numbers = #tpu.dot_dimension_numbers<[1], [0], [0], [1], [0, 0, 1, 1], [], []>} : vector<8x12xf32>, vector<12x16xf32>, vector<8x16xf32> -> vector<8x16xf32>
    %cst_13 = arith.constant 0.000000e+00 : f32
    %13 = vector.broadcast %cst_13 : f32 to vector<8x16xf32>
    %14 = arith.cmpf oge, %12, %13 : vector<8x16xf32>
    %cst_14 = arith.constant 1.000000e-01 : f32
    %15 = vector.broadcast %cst_14 : f32 to vector<8x16xf32>
    %16 = arith.mulf %15, %12 : vector<8x16xf32>
    %17 = arith.select %14, %12, %16 : vector<8x16xi1>, vector<8x16xf32>
    %c0_15 = arith.constant 0 : index
    %c0_16 = arith.constant 0 : index
    %c0_17 = arith.constant 0 : index
    %18 = vector.load %arg4[%c0_15, %c0_16, %c0_17] : memref<1x8x16xf32, #tpu.memory_space<vmem>>, vector<1x8x16xf32>
    %19 = vector.shape_cast %18 : vector<1x8x16xf32> to vector<8x16xf32>
    %20 = vector.shape_cast %17 : vector<8x16xf32> to vector<1x8x16xf32>
    tpu.vector_store %arg4[%c0_15, %c0_16, %c0_17], %20 {strides = array<i32>} : memref<1x8x16xf32, #tpu.memory_space<vmem>>, vector<1x8x16xf32>,
    return
  }
  func.func @transform_0(%arg0: i32, %arg1: i32) -> (i32, i32, i32) {
    %c0_i32 = arith.constant 0 : i32
    %c0_i32_0 = arith.constant 0 : i32
    return %arg0, %c0_i32, %arg1 : i32, i32, i32
  }
  func.func @transform_1(%arg0: i32, %arg1: i32) -> (i32, i32) {
    %c0_i32 = arith.constant 0 : i32
    %c0_i32_0 = arith.constant 0 : i32
    %c0_i32_1 = arith.constant 0 : i32
    return %c0_i32, %c0_i32_0 : i32, i32
  }
  func.func @transform_2(%arg0: i32, %arg1: i32) -> (i32, i32, i32) {
    %c0_i32 = arith.constant 0 : i32
    %c0_i32_0 = arith.constant 0 : i32
    return %arg0, %c0_i32, %arg1 : i32, i32, i32
  }
}

</mosaic_0001>

<llo_original>
// kernel: tpu_custom_call.1
$region0: #{tpu_custom_call.1}
  #allocation0 [shape = 'u32[]', space=smem, size = 0x4, offset = 0x4, fixed_abs, tag = 'smem constant byte address 0x4 - core index']
  #allocation1 [shape = 'u32[144,128]{1,0:T(1,128)}', space=vmem, size = 0x12000, scoped, tag = 'internal scratch']
  #allocation2 [shape = 'f32[12,16]{1,0:T(8,128)}', space=vmem, size = 0x2000, scoped, tag = 'scratch operand']
  %s0 = inlined_call_operand.hbm [shape: f32[2,4,16], index: 0, kind: input, shape index: {}]
  %s1 = inlined_call_operand.hbm [shape: f32[8,12], index: 1, kind: input, shape index: {}]
  %s2 = inlined_call_operand.hbm [shape: f32[2,8,16], index: 2, kind: output, shape index: {}]
  %s3 = sld [smem:[#allocation0]]
  $region49: #{tpu_custom_call.1} parent=0
    _
  %s5 = ssub.s32 1, %s3
  %s6 = scalar_select 0, %s5, %s3
  $region1: #{tpu_custom_call.1} parent=0
    #allocation3 [shape = 'u8[4096]{0}', space=vmem, size = 0x1000, scoped, tag = 'input window, operand 0']
    #allocation4 [shape = 's32[2]{0}', space=sflag, size = 0x8, scoped, tag = 'scoped memory for tpu_custom_call.1']
    #allocation5 [shape = 's32[2]{0}', space=sflag, size = 0x8, scoped, tag = 'scoped memory for tpu_custom_call.1']
    #allocation6 [shape = 'u8[4096]{0}', space=vmem, size = 0x1000, scoped, tag = 'input window, operand 1, single buffered']
    #allocation7 [shape = 's32[1]{0}', space=sflag, size = 0x4, scoped, tag = 'scoped memory for tpu_custom_call.1']
    #allocation8 [shape = 'u8[8192]{0}', space=vmem, size = 0x2000, scoped, tag = 'output window, operand 0']
    %7 = vsyncpa [#allocation4], 0
    %s8 = scalar_lea.sflag [#allocation4], 1
    %9 = vsyncpa %s8, 0
    %10 = vsyncpa [#allocation7], 0
    %11 = vsyncpa [#allocation5], 0
    %s12 = scalar_lea.sflag [#allocation5], 1
    %13 = vsyncpa %s12, 0
    loop: start=0, step=1, limit=4
    $region2: #{tpu_custom_call.1} parent=1 // loop_pre_header
      _
    $region3: #{tpu_custom_call.1} parent=1 // loop_header
      %s15 = sphi 0, %s19
      %p16 = scmp.ge.s32.totalorder %s15, 4
      %s22 = sphi 0, %s34
      %s23 = sphi 0, %s30
      %s24 = sphi 0, %s22
      %s25 = sphi 0, %s23
      %s26 = sphi 0, %s24
      %s27 = sphi 0, %s25
      %s39 = sphi 0, %s41
      %s42 = sphi 0, %s39
      %s43 = sphi 0, %s42
      %s59 = sphi 0, %s43
      %s63 = sphi 0, %s63
      %s65 = sphi 0, %s63
      %s66 = sphi 0, %s65
      %s80 = sphi 0, %s66
      %s88 = sphi 0, %s90
      %s91 = sphi 0, %s88
      %s92 = sphi 0, %s91
      %s108 = sphi 0, %s92
    $region4: #{tpu_custom_call.1} parent=1 // loop_header_branch
      %18 = sbr.rel (%p16) target = $region8
    $region5: #{tpu_custom_call.1} parent=1 // loop_body
      %s20 = ssub.s32 %s15, 1
      %s21 = ssub.s32 %s15, 2
      %s28 = sadd.s32 1, %s23
      %p29 = scmp.ge.s32.totalorder %s28, 1
      %s30 = scalar_select %p29, 0, %s28
      %s31 = sadd.s32 1, %s22
      %s32 = scalar_select %p29, %s31, %s22
      %p33 = scmp.ge.s32.totalorder %s32, 2
      %s34 = scalar_select %p33, 0, %s32
      %s35 = ssub.s32 %s22, %s34
      %s36 = ssub.s32 %s23, %s30
      %s37 = sor.u32 %s35, %s36
      %p38 = scmp.eq.s32.totalorder %s37, 0
      %s40 = sadd.s32 %s39, 1
      %s41 = scalar_select %p38, %s39, %s40
      %p44 = pneg %p38
      %p45 = scmp.eq.s32.totalorder %s15, 1
      %p46 = por %p44, %p45
      %p47 = scmp.ne.s32.totalorder %s39, %s42
      %p48 = scmp.eq.s32.totalorder %s15, 0
      %p49 = por %p47, %p48
      %p50 = scmp.ne.s32.totalorder %s39, %s42
      %p51 = scmp.eq.s32.totalorder %s20, 1
      %p52 = por %p50, %p51
      %p53 = scmp.ne.s32.totalorder %s42, %s43
      %p54 = scmp.eq.s32.totalorder %s20, 0
      %p55 = por %p53, %p54
      %p56 = scmp.ne.s32.totalorder %s42, %s43
      %p57 = scmp.eq.s32.totalorder %s21, 1
      %p58 = por %p56, %p57
      %p60 = scmp.ne.s32.totalorder %s43, %s59
      %p61 = scmp.eq.s32.totalorder %s21, 0
      %p62 = por %p60, %p61
      %s64 = sadd.s32 %s63, 1
      %p67 = scmp.eq.s32.totalorder %s15, 1
      %p68 = scmp.ne.s32.totalorder %s63, %s65
      %p69 = scmp.eq.s32.totalorder %s15, 0
      %p70 = por %p68, %p69
      %p71 = scmp.ne.s32.totalorder %s63, %s65
      %p72 = scmp.eq.s32.totalorder %s20, 1
      %p73 = por %p71, %p72
      %p74 = scmp.ne.s32.totalorder %s65, %s66
      %p75 = scmp.eq.s32.totalorder %s20, 0
      %p76 = por %p74, %p75
      %p77 = scmp.ne.s32.totalorder %s65, %s66
      %p78 = scmp.eq.s32.totalorder %s21, 1
      %p79 = por %p77, %p78
      %p81 = scmp.ne.s32.totalorder %s66, %s80
      %p82 = scmp.eq.s32.totalorder %s21, 0
      %p83 = por %p81, %p82
      %s84 = ssub.s32 %s22, %s34
      %s85 = ssub.s32 %s23, %s30
      %s86 = sor.u32 %s84, %s85
      %p87 = scmp.eq.s32.totalorder %s86, 0
      %s89 = sadd.s32 %s88, 1
      %s90 = scalar_select %p87, %s88, %s89
      %p93 = pneg %p87
      %p94 = scmp.eq.s32.totalorder %s15, 1
      %p95 = por %p93, %p94
      %p96 = scmp.ne.s32.totalorder %s88, %s91
      %p97 = scmp.eq.s32.totalorder %s15, 0
      %p98 = por %p96, %p97
      %p99 = scmp.ne.s32.totalorder %s88, %s91
      %p100 = scmp.eq.s32.totalorder %s20, 1
      %p101 = por %p99, %p100
      %p102 = scmp.ne.s32.totalorder %s91, %s92
      %p103 = scmp.eq.s32.totalorder %s20, 0
      %p104 = por %p102, %p103
      %p105 = scmp.ne.s32.totalorder %s91, %s92
      %p106 = scmp.eq.s32.totalorder %s21, 1
      %p107 = por %p105, %p106
      %p109 = scmp.ne.s32.totalorder %s92, %s108
      %p110 = scmp.eq.s32.totalorder %s21, 0
      %p111 = por %p109, %p110
      %p112 = scmp.le.s32.totalorder 1, %s15
      %p113 = scmp.lt.s32.totalorder %s15, 3
      %p114 = pnand %p112, %p113
      %p115 = pneg %p114
      // Predicated region
      $region9: #{tpu_custom_call.1} parent=5 // pred_check
        _
      $region10: #{tpu_custom_call.1} parent=5 // pred_check_branch
        %117 = sbr.rel (%p114) target = $region12
      $region11: #{tpu_custom_call.1} parent=5 // pred_region
        %s118 = ssub.s32 %s15, 1
        // Predicated region
        $region13: #{tpu_custom_call.1} parent=11 // pred_check
          %p119 = pneg %p76
        $region14: #{tpu_custom_call.1} parent=11 // pred_check_branch
          %121 = sbr.rel (%p119) target = $region16
        $region15: #{tpu_custom_call.1} parent=11 // pred_region
          %s123 = ssub.s32 128, 128
          %124 = vsyncadd [#allocation7], %s123
          %s126 = sshll.u32 [#allocation6], 4
          %s127 = int_to_ptr.vmem [resolvable:$true] %s126
          %129 = dma.hbm_to_vmem [thread:$0]  %s1, 128, %s127, [#allocation7]
        $region16: #{tpu_custom_call.1} parent=11 // pred_fallthru
          _
      $region12: #{tpu_custom_call.1} parent=5 // pred_fallthru
        _
      %p130 = scmp.lt.s32.totalorder %s15, 2
      // Predicated region
      $region17: #{tpu_custom_call.1} parent=5 // pred_check
        %p131 = pneg %p130
      $region18: #{tpu_custom_call.1} parent=5 // pred_check_branch
        %133 = sbr.rel (%p131) target = $region20
      $region19: #{tpu_custom_call.1} parent=5 // pred_region
        // Predicated region
        $region21: #{tpu_custom_call.1} parent=19 // pred_check
          %p134 = pneg %p49
        $region22: #{tpu_custom_call.1} parent=19 // pred_check_branch
          %136 = sbr.rel (%p134) target = $region24
        $region23: #{tpu_custom_call.1} parent=19 // pred_region
          %s137 = sand.u32 %s39, 1
          %s138 = scalar_lea.sflag [#allocation4], %s137
          %s139 = sand.u32 %s39, 1
          %s140 = smul.addr %s139, 4
          %s141 = scalar_lea.vmem [#allocation3], %s140
          %s143 = ssub.s32 64, 64
          %144 = vsyncadd %s138, %s143
          %s145 = sadd.s32 %s23, %s22
          %s146 = smul.addr %s145, 64
          %s147 = scalar_lea.hbm %s0, %s146
          %s149 = sshll.u32 %s141, 4
          %s150 = int_to_ptr.vmem [resolvable:$true] %s149
          %152 = dma.hbm_to_vmem [thread:$0]  %s147, 64, %s150, %s138
        $region24: #{tpu_custom_call.1} parent=19 // pred_fallthru
          _
      $region20: #{tpu_custom_call.1} parent=5 // pred_fallthru
        _
      %p153 = scmp.le.s32.totalorder 1, %s15
      %p154 = scmp.lt.s32.totalorder %s15, 3
      %p155 = pnand %p153, %p154
      %p156 = pneg %p155
      // Predicated region
      $region25: #{tpu_custom_call.1} parent=5 // pred_check
        _
      $region26: #{tpu_custom_call.1} parent=5 // pred_check_branch
        %158 = sbr.rel (%p155) target = $region28
      $region27: #{tpu_custom_call.1} parent=5 // pred_region
        %s159 = ssub.s32 %s15, 1
        %s160 = sand.u32 %s42, 1
        %s161 = scalar_lea.sflag [#allocation4], %s160
        %s162 = sand.u32 %s42, 1
        %s163 = smul.addr %s162, 4
        %s164 = scalar_lea.vmem [#allocation3], %s163
        // Predicated region
        $region29: #{tpu_custom_call.1} parent=27 // pred_check
          %p165 = pneg %p55
        $region30: #{tpu_custom_call.1} parent=27 // pred_check_branch
          %167 = sbr.rel (%p165) target = $region32
        $region31: #{tpu_custom_call.1} parent=27 // pred_region
          %168 = dma.done %s161, 64
        $region32: #{tpu_custom_call.1} parent=27 // pred_fallthru
          _
        // Predicated region
        $region33: #{tpu_custom_call.1} parent=27 // pred_check
          %p169 = pneg %p76
        $region34: #{tpu_custom_call.1} parent=27 // pred_check_branch
          %171 = sbr.rel (%p169) target = $region36
        $region35: #{tpu_custom_call.1} parent=27 // pred_region
          %172 = dma.done [#allocation7], 128
        $region36: #{tpu_custom_call.1} parent=27 // pred_fallthru
          _
        %s173 = sand.u32 %s42, 1
        %s174 = scalar_lea.sflag [#allocation4], %s173
        %s175 = sand.u32 %s42, 1
        %s176 = smul.addr %s175, 4
        %s177 = scalar_lea.vmem [#allocation3], %s176
        %p178 = pneg %p55
        %p179 = pneg %p52
        %p180 = pneg %p76
        %p181 = pneg %p73
        %p182 = pneg %p104
        %p183 = pneg %p101
        %s184 = sand.u32 %s91, 1
        %s185 = scalar_lea.sflag [#allocation5], %s184
        %s186 = sand.u32 %s91, 1
        %s187 = smul.addr %s186, 8
        %s188 = scalar_lea.vmem [#allocation8], %s187
        %v189 = vld [vmem:[%s164] sm:$0xf]
        %vm190 = vcmask 125952
        %191 = vst.msk [vmem:[#allocation2 + $0x4] sm:$0xf] %vm190, %v189
        %193 = vrot.lane.b32.xlu0 %v189, 1
        %v194 = vpop.permute.xlu0 %193
        %vm196 = vcmask 125960
        %197 = vst.msk [vmem:[#allocation2] sm:$0xf] %vm196, %v194
        %vm198 = vcmask 3072
        %199 = vst.msk [vmem:[#allocation2] sm:$0xf] %vm198, 0.0
        %200 = vrot.lane.b32.xlu0 %v189, 127
        %v201 = vpop.permute.xlu0 %200
        %vm203 = vcmask 117760
        %204 = vst.msk [vmem:[#allocation2 + $0x8] sm:$0xf] %vm203, %v201
        %vm205 = vcmask 126072
        %206 = vst.msk [vmem:[#allocation2 + $0x8] sm:$0xf] %vm205, 0.0
        %v207 = vld [vmem:[#allocation6] sm:$0xff]
        %v208 = vld [vmem:[#allocation2] sm:$0xff]
        %v209 = vld [vmem:[#allocation2 + $0x8] sm:$0xf]
        %vm210 = vcmask 97280
        %v212 = vsel %vm210, %v207, 0
        %vm214 = vcmask 1043456
        %v216 = vsel %vm214, %v209, 0
        %218 = vmatprep.subr.mxu0 0.0
        %219 = vmatpush1.msra.mxu0 %v208
        %220 = vmatprep.subr.mxu0 0.0
        %221 = vmatpush1.msra.mxu0 %v216
        %222 = vmatprep.subr.mxu0 0.0
        %223 = vmatpush1.msra.mxu0 0.0
        %224 = vmatprep.subr.mxu0 0.0
        %225 = vmatpush1.msra.mxu0 0.0
        %226 = vmatprep.subr.mxu0 0.0
        %227 = vmatpush1.msra.mxu0 0.0
        %228 = vmatprep.subr.mxu0 0.0
        %229 = vmatpush1.msra.mxu0 0.0
        %230 = vmatprep.subr.mxu0 0.0
        %231 = vmatpush1.msra.mxu0 0.0
        %232 = vmatprep.subr.mxu0 0.0
        %233 = vmatpush1.msra.mxu0 0.0
        %234 = vmatprep.subr.mxu0 0.0
        %235 = vmatpush1.msra.mxu0 0.0
        %236 = vmatprep.subr.mxu0 0.0
        %237 = vmatpush1.msra.mxu0 0.0
        %238 = vmatprep.subr.mxu0 0.0
        %239 = vmatpush1.msra.mxu0 0.0
        %240 = vmatprep.subr.mxu0 0.0
        %241 = vmatpush1.msra.mxu0 0.0
        %242 = vmatprep.subr.mxu0 0.0
        %243 = vmatpush1.msra.mxu0 0.0
        %244 = vmatprep.subr.mxu0 0.0
        %245 = vmatpush1.msra.mxu0 0.0
        %246 = vmatprep.subr.mxu0 0.0
        %247 = vmatpush1.msra.mxu0 0.0
        %248 = vmatprep.subr.mxu0 0.0
        %249 = vmatpush1.msra.mxu0 0.0
        %250 = vmatprep.subr.mxu0 0.0
        %251 = vmatpush1.msra.mxu0 0.0
        %252 = vmatprep.subr.mxu0 0.0
        %253 = vmatpush1.msra.mxu0 0.0
        %254 = vmatprep.subr.mxu0 0.0
        %255 = vmatpush1.msra.mxu0 0.0
        %256 = vmatprep.subr.mxu0 0.0
        %257 = vmatpush1.msra.mxu0 0.0
        %258 = vmatprep.subr.mxu0 0.0
        %259 = vmatpush1.msra.mxu0 0.0
        %260 = vmatprep.subr.mxu0 0.0
        %261 = vmatpush1.msra.mxu0 0.0
        %262 = vmatprep.subr.mxu0 0.0
        %263 = vmatpush1.msra.mxu0 0.0
        %264 = vmatprep.subr.mxu0 0.0
        %265 = vmatpush1.msra.mxu0 0.0
        %266 = vmatprep.subr.mxu0 0.0
        %267 = vmatpush1.msra.mxu0 0.0
        %268 = vmatprep.subr.mxu0 0.0
        %269 = vmatpush1.msra.mxu0 0.0
        %270 = vmatprep.subr.mxu0 0.0
        %271 = vmatpush1.msra.mxu0 0.0
        %272 = vmatprep.subr.mxu0 0.0
        %273 = vmatpush1.msra.mxu0 0.0
        %274 = vmatprep.subr.mxu0 0.0
        %275 = vmatpush1.msra.mxu0 0.0
        %276 = vmatprep.subr.mxu0 0.0
        %277 = vmatpush1.msra.mxu0 0.0
        %278 = vmatprep.subr.mxu0 0.0
        %279 = vmatpush1.msra.mxu0 0.0
        %280 = vmatprep.subr.mxu0 0.0
        %281 = vmatpush1.msra.mxu0 0.0
        %282 = vmatprep.mubr.f32.mxu0 0.0
        %283 = vmatmul.mubr.f32.gmra.mrb[0].mxu0 %v212
        %v284 = vpop.f32.mrb[0].mxu0
        %v285 = vadd.f32 0.0, %v284
        %v286 = vpop.f32.mrb[0].mxu0
        %287 = vdwg.mxu0
        %vm288 = vcmp.ge.f32.partialorder %v285, 0.0
        %v289 = vmul.f32 %v285, 0.1
        %v290 = vsel %vm288, %v285, %v289
        %vm291 = vcmask 130048
        %292 = vst.msk [vmem:[%s188] sm:$0xff] %vm291, %v290
        %s293 = sand.u32 %s91, 1
        %s294 = scalar_lea.sflag [#allocation5], %s293
        %s295 = sand.u32 %s91, 1
        %s296 = smul.addr %s295, 8
        %s297 = scalar_lea.vmem [#allocation8], %s296
        // Predicated region
        $region37: #{tpu_custom_call.1} parent=27 // pred_check
          %p298 = pneg %p101
        $region38: #{tpu_custom_call.1} parent=27 // pred_check_branch
          %300 = sbr.rel (%p298) target = $region40
        $region39: #{tpu_custom_call.1} parent=27 // pred_region
          %s302 = ssub.s32 128, 128
          %303 = vsyncadd %s294, %s302
          %s304 = sadd.s32 %s25, %s24
          %s305 = smul.addr %s304, 128
          %s306 = scalar_lea.hbm %s2, %s305
          %s308 = sshll.u32 %s297, 4
          %s309 = int_to_ptr.vmem [resolvable:$true] %s308
          %311 = dma.vmem_to_hbm [thread:$0]  %s309, 128, %s306, %s294
        $region40: #{tpu_custom_call.1} parent=27 // pred_fallthru
          _
      $region28: #{tpu_custom_call.1} parent=5 // pred_fallthru
        _
      %p312 = scmp.le.s32.totalorder 2, %s15
      // Predicated region
      $region41: #{tpu_custom_call.1} parent=5 // pred_check
        %p313 = pneg %p312
      $region42: #{tpu_custom_call.1} parent=5 // pred_check_branch
        %315 = sbr.rel (%p313) target = $region44
      $region43: #{tpu_custom_call.1} parent=5 // pred_region
        %s316 = ssub.s32 %s15, 2
        // Predicated region
        $region45: #{tpu_custom_call.1} parent=43 // pred_check
          %p317 = pneg %p107
        $region46: #{tpu_custom_call.1} parent=43 // pred_check_branch
          %319 = sbr.rel (%p317) target = $region48
        $region47: #{tpu_custom_call.1} parent=43 // pred_region
          %s320 = sand.u32 %s92, 1
          %s321 = scalar_lea.sflag [#allocation5], %s320
          %s322 = sand.u32 %s92, 1
          %s323 = smul.addr %s322, 8
          %s324 = scalar_lea.vmem [#allocation8], %s323
          %325 = dma.done %s321, 128
        $region48: #{tpu_custom_call.1} parent=43 // pred_fallthru
          _
      $region44: #{tpu_custom_call.1} parent=5 // pred_fallthru
        _
    $region6: #{tpu_custom_call.1} parent=1 // loop_footer
      %s19 = sadd.s32 1, %s15
    $region7: #{tpu_custom_call.1} parent=1 // loop_footer_branch
      %14 = sbr.rel target = $region3
    $region8: #{tpu_custom_call.1} parent=1 // loop_exit
      _
    %326 = vsyncpa [#allocation4], 1
    %s327 = scalar_lea.sflag [#allocation4], 1
    %328 = vsyncpa %s327, 1
    %329 = vsyncpa [#allocation7], 1
    %330 = vsyncpa [#allocation5], 1
    %s331 = scalar_lea.sflag [#allocation5], 1
    %332 = vsyncpa %s331, 1

</llo_original>
